<compile_context>
chip_gen: v7x
topology: tpu7x:2x2x1
jax: 0.10.0
libtpu: 0.0.40
codegen_flags: <defaults>
</compile_context>

<pallas_src>
from functools import partial

import numpy as np

import jax
import jax.numpy as jnp
from jax.experimental import pallas as pl
from jax.experimental.pallas import tpu as pltpu


def _round_up(a, b):
    return (a + b - 1) // b * b


def _choose_tile_h(OH, OW, OCp, fixed_bytes, out_itemsize,
                   budget=24 * 1024 * 1024, max_rows=8192):
    """Largest divisor TH of OH whose tile fits the VMEM budget (lane/sublane legal)."""
    for th in range(OH, 0, -1):
        if OH % th:
            continue
        thw = th * OW
        if th != OH and thw % 8:
            continue
        per_tile = thw * OCp * (2 * out_itemsize + 4)   # 2 out buffers + f32 acc
        if thw <= max_rows and fixed_bytes + per_tile <= budget:
            return th
    return OH   # fallback: single tile (see TODO above for very large images)


def _make_conv_kernel(K, Q, stride, TH, OW, sC):
    THW = TH * OW

    def kernel(x_ref, w_ref, b_ref, o_ref, acc_ref):
        # x_ref : (HB, stride, WB, stride*C)  phase-decomposed padded image (resident)
        # w_ref : (K, Q, stride*C, OCp)       packed weights (resident)
        # b_ref : (1, OCp)                    f32 bias row
        # o_ref : (1, TH*OW, OCp)             lane-dense output tile
        # acc_ref: (TH*OW, OCp) f32           VMEM accumulator
        ht = pl.program_id(1)
        row0 = ht * TH
        first = True
        for i in range(K):                 # row tap
            hi, hr = divmod(i, stride)     # H-phase decomposition of the tap
            for q in range(Q):             # W-phase group of taps (stride taps merged)
                xs = x_ref[pl.ds(row0 + hi, TH), hr, pl.ds(q, OW), :]   # (TH, OW, sC)
                lhs = xs.reshape(THW, sC)
                part = jnp.dot(lhs, w_ref[i, q],
                               preferred_element_type=jnp.float32)
                if first:
                    acc_ref[...] = part
                    first = False
                else:
                    acc_ref[...] += part
        # epilogue in f32 (bias stays f32 even when MXU operands are bf16)
        o_ref[0] = (acc_ref[...] + b_ref[...]).astype(o_ref.dtype)

    return kernel


@partial(jax.jit, static_argnums=(3,), static_argnames=("compute_dtype",))
def conv_layer(x, weight, bias, stride, *, compute_dtype=None):
    """ReflectionPad2d(K // 2) + Conv2d(in_ch, out_ch, K, stride) forward.

    x: (N, C, H, W); weight: (OC, C, K, K); bias: (OC,)  ->  (N, OC, OH, OW)
    compute_dtype: optional MXU operand dtype (e.g. jnp.bfloat16 on v6e/v7x);
                   accumulation and bias add stay f32.
    """
    N, C, H, W = x.shape
    OC, Cw, K, Kw = weight.shape
    assert Cw == C and Kw == K
    s = int(stride)
    pad = K // 2
    out_dtype = x.dtype
    cdt = np.dtype(out_dtype if compute_dtype is None else compute_dtype)

    # ---- single fused pre-pass: NCHW->NHWC, reflection pad, phase reshape -----
    xh = jnp.transpose(x, (0, 2, 3, 1))
    xh = jnp.pad(xh, ((0, 0), (pad, pad), (pad, pad), (0, 0)), mode="reflect")
    Hp, Wp = H + 2 * pad, W + 2 * pad
    OH = (Hp - K) // s + 1
    OW = (Wp - K) // s + 1
    Q = (K - 1) // s + 1                      # number of W-phase tap groups

    Hp2 = _round_up(Hp, s)
    Wp2 = max(_round_up(Wp, s), (OW + (K - 1) // s) * s)
    if Hp2 != Hp or Wp2 != Wp:
        xh = jnp.pad(xh, ((0, 0), (0, Hp2 - Hp), (0, Wp2 - Wp), (0, 0)))
    xh = xh.astype(cdt)
    HB, WB, sC = Hp2 // s, Wp2 // s, s * C
    # free row-major reshape: split H/W by stride phase, fold the W phase into lanes
    x_s2d = xh.reshape(N * HB, s, WB, sC)

    # ---- packed weights: (OC, C, K, K) -> (K, Q, s*C, OCp), lane-dense OCp ----
    OCp = _round_up(OC, 128)
    wt = jnp.transpose(weight, (2, 3, 1, 0))                       # (Ki, Kj, C, OC)
    wt = jnp.pad(wt, ((0, 0), (0, Q * s - K), (0, 0), (0, OCp - OC)))
    w_packed = wt.reshape(K, Q, s, C, OCp).reshape(K, Q, sC, OCp).astype(cdt)
    b_row = jnp.pad(bias, (0, OCp - OC)).reshape(1, OCp).astype(jnp.float32)

    # ---- output-row tiling under a VMEM budget --------------------------------
    itemsize = cdt.itemsize
    fixed_bytes = (2 * HB * s * WB * sC * itemsize        # image block (x2 buffers)
                   + 2 * K * Q * sC * OCp * itemsize      # packed weights
                   + 2 * OCp * 4)                         # bias
    TH = _choose_tile_h(OH, OW, OCp, fixed_bytes, np.dtype(out_dtype).itemsize)
    THW = TH * OW
    n_ht = OH // TH

    kernel = _make_conv_kernel(K, Q, s, TH, OW, sC)

    out = pl.pallas_call(
        kernel,
        out_shape=jax.ShapeDtypeStruct((N, OH * OW, OCp), out_dtype),
        grid_spec=pltpu.PrefetchScalarGridSpec(
            num_scalar_prefetch=0,
            grid=(N, n_ht),
            in_specs=[
                # whole phase-decomposed padded image n; index_map ignores the
                # h axis so the block stays resident across the h-tiles.
                pl.BlockSpec((HB, s, WB, sC), lambda n, h: (n, 0, 0, 0)),
                pl.BlockSpec((K, Q, sC, OCp), lambda n, h: (0, 0, 0, 0)),
                pl.BlockSpec((1, OCp), lambda n, h: (0, 0)),
            ],
            out_specs=pl.BlockSpec((1, THW, OCp), lambda n, h: (n, h, 0)),
            scratch_shapes=[pltpu.VMEM((THW, OCp), jnp.float32)],
        ),
        compiler_params=pltpu.CompilerParams(
            dimension_semantics=("parallel", "parallel"),
            vmem_limit_bytes=32 * 1024 * 1024,
        ),
    )(x_s2d, w_packed, b_row)

    out = out.reshape(N, OH, OW, OCp)[:, :, :, :OC]
    return jnp.transpose(out, (0, 3, 1, 2))                        # NHWC -> NCHW


if __name__ == "__main__":
    # Small shapes consistent with the module (transformer_net-style conv).
    N, C, H, W = 2, 4, 16, 16
    OC, K, stride = 8, 3, 2

    key = jax.random.PRNGKey(0)
    kx, kw, kb = jax.random.split(key, 3)
    x = jax.random.normal(kx, (N, C, H, W), dtype=jnp.float32)
    weight = jax.random.normal(kw, (OC, C, K, K), dtype=jnp.float32) * 0.1
    bias = jax.random.normal(kb, (OC,), dtype=jnp.float32) * 0.1

    # Reference: XLA conv on the reflection-padded input.
    xp = jnp.pad(x, ((0, 0), (0, 0), (K // 2, K // 2), (K // 2, K // 2)),
                 mode="reflect")

    def ref_conv(st):
        return jax.lax.conv_general_dilated(
            xp, weight, window_strides=(st, st), padding="VALID",
            dimension_numbers=("NCHW", "OIHW", "NCHW")) + bias.reshape(1, OC, 1, 1)

    # 1) f32 path, stride = 2 (the module's configuration)
    out = jax.block_until_ready(conv_layer(x, weight, bias, stride))
    ref = ref_conv(stride)
    assert out.shape == ref.shape, (out.shape, ref.shape)
    assert jnp.allclose(out, ref, atol=1e-4, rtol=1e-4), "f32 stride-2 mismatch"

    # 2) bf16 MXU-operand path (v6e/v7x optimization), f32 accumulate/epilogue
    out_bf16 = jax.block_until_ready(
        conv_layer(x, weight, bias, stride, compute_dtype=jnp.bfloat16))
    assert jnp.allclose(out_bf16, ref, atol=1e-1, rtol=1e-1), "bf16 mismatch"

    # 3) stride = 1 path (residual-block style conv)
    out_s1 = jax.block_until_ready(conv_layer(x, weight, bias, 1))
    ref_s1 = ref_conv(1)
    assert out_s1.shape == ref_s1.shape
    assert jnp.allclose(out_s1, ref_s1, atol=1e-4, rtol=1e-4), "stride-1 mismatch"

    print("KERNEL_OK")
</pallas_src>

<mosaic_0001>
module attributes {stable_mosaic.version = 11 : i64} {
  func.func @kernel(%arg0: i32, %arg1: i32, %arg2: memref<9x2x9x8xf32, #tpu.memory_space<vmem>>, %arg3: memref<3x2x8x128xf32, #tpu.memory_space<vmem>>, %arg4: memref<1x128xf32, #tpu.memory_space<vmem>>, %arg5: memref<1x64x128xf32, #tpu.memory_space<vmem>>, %arg6: memref<64x128xf32, #tpu.memory_space<vmem>>) attributes {dimension_semantics = [#tpu.dimension_semantics<parallel>, #tpu.dimension_semantics<parallel>], iteration_bounds = array<i64: 2, 1>, scalar_prefetch = 0 : i64, scratch_operands = 1 : i64, tpu.core_type = #tpu.core_type<tc>, window_params = [{transform_indices = @transform_0, window_bounds = array<i64: 9, 2, 9, 8>}, {pipeline_mode = #tpu.pipeline_mode<synchronous>, transform_indices = @transform_1, window_bounds = array<i64: 3, 2, 8, 128>}, {pipeline_mode = #tpu.pipeline_mode<synchronous>, transform_indices = @transform_2, window_bounds = array<i64: 1, 128>}, {transform_indices = @transform_3, window_bounds = array<i64: 1, 64, 128>}]} {
    %c8_i32 = arith.constant 8 : i32
    %0 = arith.muli %arg1, %c8_i32 : i32
    %c0_i32 = arith.constant 0 : i32
    %1 = arith.addi %0, %c0_i32 : i32
    %2 = arith.index_cast %1 : i32 to index
    %c0 = arith.constant 0 : index
    %c0_0 = arith.constant 0 : index
    %c0_1 = arith.constant 0 : index
    %3 = vector.load %arg2[%2, %c0, %c0_0, %c0_1] : memref<9x2x9x8xf32, #tpu.memory_space<vmem>>, vector<8x1x8x8xf32>
    %4 = vector.shape_cast %3 : vector<8x1x8x8xf32> to vector<8x8x8xf32>
    %5 = vector.shape_cast %4 : vector<8x8x8xf32> to vector<64x8xf32>
    %c0_2 = arith.constant 0 : index
    %c0_3 = arith.constant 0 : index
    %c0_4 = arith.constant 0 : index
    %c0_5 = arith.constant 0 : index
    %6 = vector.load %arg3[%c0_2, %c0_3, %c0_4, %c0_5] : memref<3x2x8x128xf32, #tpu.memory_space<vmem>>, vector<1x1x8x128xf32>
    %7 = vector.shape_cast %6 : vector<1x1x8x128xf32> to vector<8x128xf32>
    %cst = arith.constant dense<0.000000e+00> : vector<64x128xf32>
    %8 = tpu.matmul %5, %7, %cst {dimension_numbers = #tpu.dot_dimension_numbers<[1], [0], [0], [1], [0, 0, 1, 1], [], []>} : vector<64x8xf32>, vector<8x128xf32>, vector<64x128xf32> -> vector<64x128xf32>
    %c0_6 = arith.constant 0 : index
    %c0_7 = arith.constant 0 : index
    %9 = vector.load %arg6[%c0_6, %c0_7] : memref<64x128xf32, #tpu.memory_space<vmem>>, vector<64x128xf32>
    tpu.vector_store %arg6[%c0_6, %c0_7], %8 {strides = array<i32>} : memref<64x128xf32, #tpu.memory_space<vmem>>, vector<64x128xf32>,
    %c0_i32_8 = arith.constant 0 : i32
    %10 = arith.addi %0, %c0_i32_8 : i32
    %11 = arith.index_cast %10 : i32 to index
    %c0_9 = arith.constant 0 : index
    %c1 = arith.constant 1 : index
    %c0_10 = arith.constant 0 : index
    %12 = vector.load %arg2[%11, %c0_9, %c1, %c0_10] : memref<9x2x9x8xf32, #tpu.memory_space<vmem>>, vector<8x1x8x8xf32>
    %13 = vector.shape_cast %12 : vector<8x1x8x8xf32> to vector<8x8x8xf32>
    %14 = vector.shape_cast %13 : vector<8x8x8xf32> to vector<64x8xf32>
    %c0_11 = arith.constant 0 : index
    %c1_12 = arith.constant 1 : index
    %c0_13 = arith.constant 0 : index
    %c0_14 = arith.constant 0 : index
    %15 = vector.load %arg3[%c0_11, %c1_12, %c0_13, %c0_14] : memref<3x2x8x128xf32, #tpu.memory_space<vmem>>, vector<1x1x8x128xf32>
    %16 = vector.shape_cast %15 : vector<1x1x8x128xf32> to vector<8x128xf32>
    %cst_15 = arith.constant dense<0.000000e+00> : vector<64x128xf32>
    %17 = tpu.matmul %14, %16, %cst_15 {dimension_numbers = #tpu.dot_dimension_numbers<[1], [0], [0], [1], [0, 0, 1, 1], [], []>} : vector<64x8xf32>, vector<8x128xf32>, vector<64x128xf32> -> vector<64x128xf32>
    %c0_16 = arith.constant 0 : index
    %c0_17 = arith.constant 0 : index
    %18 = vector.load %arg6[%c0_16, %c0_17] : memref<64x128xf32, #tpu.memory_space<vmem>>, vector<64x128xf32>
    %19 = arith.addf %18, %17 : vector<64x128xf32>
    %c0_18 = arith.constant 0 : index
    %c0_19 = arith.constant 0 : index
    %20 = vector.load %arg6[%c0_18, %c0_19] : memref<64x128xf32, #tpu.memory_space<vmem>>, vector<64x128xf32>
    tpu.vector_store %arg6[%c0_18, %c0_19], %19 {strides = array<i32>} : memref<64x128xf32, #tpu.memory_space<vmem>>, vector<64x128xf32>,
    %c0_i32_20 = arith.constant 0 : i32
    %21 = arith.addi %0, %c0_i32_20 : i32
    %22 = arith.index_cast %21 : i32 to index
    %c1_21 = arith.constant 1 : index
    %c0_22 = arith.constant 0 : index
    %c0_23 = arith.constant 0 : index
    %23 = vector.load %arg2[%22, %c1_21, %c0_22, %c0_23] : memref<9x2x9x8xf32, #tpu.memory_space<vmem>>, vector<8x1x8x8xf32>
    %24 = vector.shape_cast %23 : vector<8x1x8x8xf32> to vector<8x8x8xf32>
    %25 = vector.shape_cast %24 : vector<8x8x8xf32> to vector<64x8xf32>
    %c1_24 = arith.constant 1 : index
    %c0_25 = arith.constant 0 : index
    %c0_26 = arith.constant 0 : index
    %c0_27 = arith.constant 0 : index
    %26 = vector.load %arg3[%c1_24, %c0_25, %c0_26, %c0_27] : memref<3x2x8x128xf32, #tpu.memory_space<vmem>>, vector<1x1x8x128xf32>
    %27 = vector.shape_cast %26 : vector<1x1x8x128xf32> to vector<8x128xf32>
    %cst_28 = arith.constant dense<0.000000e+00> : vector<64x128xf32>
    %28 = tpu.matmul %25, %27, %cst_28 {dimension_numbers = #tpu.dot_dimension_numbers<[1], [0], [0], [1], [0, 0, 1, 1], [], []>} : vector<64x8xf32>, vector<8x128xf32>, vector<64x128xf32> -> vector<64x128xf32>
    %c0_29 = arith.constant 0 : index
    %c0_30 = arith.constant 0 : index
    %29 = vector.load %arg6[%c0_29, %c0_30] : memref<64x128xf32, #tpu.memory_space<vmem>>, vector<64x128xf32>
    %30 = arith.addf %29, %28 : vector<64x128xf32>
    %c0_31 = arith.constant 0 : index
    %c0_32 = arith.constant 0 : index
    %31 = vector.load %arg6[%c0_31, %c0_32] : memref<64x128xf32, #tpu.memory_space<vmem>>, vector<64x128xf32>
    tpu.vector_store %arg6[%c0_31, %c0_32], %30 {strides = array<i32>} : memref<64x128xf32, #tpu.memory_space<vmem>>, vector<64x128xf32>,
    %c0_i32_33 = arith.constant 0 : i32
    %32 = arith.addi %0, %c0_i32_33 : i32
    %33 = arith.index_cast %32 : i32 to index
    %c1_34 = arith.constant 1 : index
    %c1_35 = arith.constant 1 : index
    %c0_36 = arith.constant 0 : index
    %34 = vector.load %arg2[%33, %c1_34, %c1_35, %c0_36] : memref<9x2x9x8xf32, #tpu.memory_space<vmem>>, vector<8x1x8x8xf32>
    %35 = vector.shape_cast %34 : vector<8x1x8x8xf32> to vector<8x8x8xf32>
    %36 = vector.shape_cast %35 : vector<8x8x8xf32> to vector<64x8xf32>
    %c1_37 = arith.constant 1 : index
    %c1_38 = arith.constant 1 : index
    %c0_39 = arith.constant 0 : index
    %c0_40 = arith.constant 0 : index
    %37 = vector.load %arg3[%c1_37, %c1_38, %c0_39, %c0_40] : memref<3x2x8x128xf32, #tpu.memory_space<vmem>>, vector<1x1x8x128xf32>
    %38 = vector.shape_cast %37 : vector<1x1x8x128xf32> to vector<8x128xf32>
    %cst_41 = arith.constant dense<0.000000e+00> : vector<64x128xf32>
    %39 = tpu.matmul %36, %38, %cst_41 {dimension_numbers = #tpu.dot_dimension_numbers<[1], [0], [0], [1], [0, 0, 1, 1], [], []>} : vector<64x8xf32>, vector<8x128xf32>, vector<64x128xf32> -> vector<64x128xf32>
    %c0_42 = arith.constant 0 : index
    %c0_43 = arith.constant 0 : index
    %40 = vector.load %arg6[%c0_42, %c0_43] : memref<64x128xf32, #tpu.memory_space<vmem>>, vector<64x128xf32>
    %41 = arith.addf %40, %39 : vector<64x128xf32>
    %c0_44 = arith.constant 0 : index
    %c0_45 = arith.constant 0 : index
    %42 = vector.load %arg6[%c0_44, %c0_45] : memref<64x128xf32, #tpu.memory_space<vmem>>, vector<64x128xf32>
    tpu.vector_store %arg6[%c0_44, %c0_45], %41 {strides = array<i32>} : memref<64x128xf32, #tpu.memory_space<vmem>>, vector<64x128xf32>,
    %c1_i32 = arith.constant 1 : i32
    %43 = arith.addi %0, %c1_i32 : i32
    %44 = arith.index_cast %43 : i32 to index
    %c0_46 = arith.constant 0 : index
    %c0_47 = arith.constant 0 : index
    %c0_48 = arith.constant 0 : index
    %45 = vector.load %arg2[%44, %c0_46, %c0_47, %c0_48] : memref<9x2x9x8xf32, #tpu.memory_space<vmem>>, vector<8x1x8x8xf32>
    %46 = vector.shape_cast %45 : vector<8x1x8x8xf32> to vector<8x8x8xf32>
    %47 = vector.shape_cast %46 : vector<8x8x8xf32> to vector<64x8xf32>
    %c2 = arith.constant 2 : index
    %c0_49 = arith.constant 0 : index
    %c0_50 = arith.constant 0 : index
    %c0_51 = arith.constant 0 : index
    %48 = vector.load %arg3[%c2, %c0_49, %c0_50, %c0_51] : memref<3x2x8x128xf32, #tpu.memory_space<vmem>>, vector<1x1x8x128xf32>
    %49 = vector.shape_cast %48 : vector<1x1x8x128xf32> to vector<8x128xf32>
    %cst_52 = arith.constant dense<0.000000e+00> : vector<64x128xf32>
    %50 = tpu.matmul %47, %49, %cst_52 {dimension_numbers = #tpu.dot_dimension_numbers<[1], [0], [0], [1], [0, 0, 1, 1], [], []>} : vector<64x8xf32>, vector<8x128xf32>, vector<64x128xf32> -> vector<64x128xf32>
    %c0_53 = arith.constant 0 : index
    %c0_54 = arith.constant 0 : index
    %51 = vector.load %arg6[%c0_53, %c0_54] : memref<64x128xf32, #tpu.memory_space<vmem>>, vector<64x128xf32>
    %52 = arith.addf %51, %50 : vector<64x128xf32>
    %c0_55 = arith.constant 0 : index
    %c0_56 = arith.constant 0 : index
    %53 = vector.load %arg6[%c0_55, %c0_56] : memref<64x128xf32, #tpu.memory_space<vmem>>, vector<64x128xf32>
    tpu.vector_store %arg6[%c0_55, %c0_56], %52 {strides = array<i32>} : memref<64x128xf32, #tpu.memory_space<vmem>>, vector<64x128xf32>,
    %c1_i32_57 = arith.constant 1 : i32
    %54 = arith.addi %0, %c1_i32_57 : i32
    %55 = arith.index_cast %54 : i32 to index
    %c0_58 = arith.constant 0 : index
    %c1_59 = arith.constant 1 : index
    %c0_60 = arith.constant 0 : index
    %56 = vector.load %arg2[%55, %c0_58, %c1_59, %c0_60] : memref<9x2x9x8xf32, #tpu.memory_space<vmem>>, vector<8x1x8x8xf32>
    %57 = vector.shape_cast %56 : vector<8x1x8x8xf32> to vector<8x8x8xf32>
    %58 = vector.shape_cast %57 : vector<8x8x8xf32> to vector<64x8xf32>
    %c2_61 = arith.constant 2 : index
    %c1_62 = arith.constant 1 : index
    %c0_63 = arith.constant 0 : index
    %c0_64 = arith.constant 0 : index
    %59 = vector.load %arg3[%c2_61, %c1_62, %c0_63, %c0_64] : memref<3x2x8x128xf32, #tpu.memory_space<vmem>>, vector<1x1x8x128xf32>
    %60 = vector.shape_cast %59 : vector<1x1x8x128xf32> to vector<8x128xf32>
    %cst_65 = arith.constant dense<0.000000e+00> : vector<64x128xf32>
    %61 = tpu.matmul %58, %60, %cst_65 {dimension_numbers = #tpu.dot_dimension_numbers<[1], [0], [0], [1], [0, 0, 1, 1], [], []>} : vector<64x8xf32>, vector<8x128xf32>, vector<64x128xf32> -> vector<64x128xf32>
    %c0_66 = arith.constant 0 : index
    %c0_67 = arith.constant 0 : index
    %62 = vector.load %arg6[%c0_66, %c0_67] : memref<64x128xf32, #tpu.memory_space<vmem>>, vector<64x128xf32>
    %63 = arith.addf %62, %61 : vector<64x128xf32>
    %c0_68 = arith.constant 0 : index
    %c0_69 = arith.constant 0 : index
    %64 = vector.load %arg6[%c0_68, %c0_69] : memref<64x128xf32, #tpu.memory_space<vmem>>, vector<64x128xf32>
    tpu.vector_store %arg6[%c0_68, %c0_69], %63 {strides = array<i32>} : memref<64x128xf32, #tpu.memory_space<vmem>>, vector<64x128xf32>,
    %c0_70 = arith.constant 0 : index
    %c0_71 = arith.constant 0 : index
    %65 = vector.load %arg6[%c0_70, %c0_71] : memref<64x128xf32, #tpu.memory_space<vmem>>, vector<64x128xf32>
    %c0_72 = arith.constant 0 : index
    %c0_73 = arith.constant 0 : index
    %66 = vector.load %arg4[%c0_72, %c0_73] : memref<1x128xf32, #tpu.memory_space<vmem>>, vector<1x128xf32>
    %67 = vector.broadcast %66 : vector<1x128xf32> to vector<64x128xf32>
    %68 = arith.addf %65, %67 : vector<64x128xf32>
    %c0_74 = arith.constant 0 : index
    %c0_75 = arith.constant 0 : index
    %c0_76 = arith.constant 0 : index
    %69 = vector.load %arg5[%c0_74, %c0_75, %c0_76] : memref<1x64x128xf32, #tpu.memory_space<vmem>>, vector<1x64x128xf32>
    %70 = vector.shape_cast %69 : vector<1x64x128xf32> to vector<64x128xf32>
    %71 = vector.shape_cast %68 : vector<64x128xf32> to vector<1x64x128xf32>
    tpu.vector_store %arg5[%c0_74, %c0_75, %c0_76], %71 {strides = array<i32>} : memref<1x64x128xf32, #tpu.memory_space<vmem>>, vector<1x64x128xf32>,
    return
  }
  func.func @transform_0(%arg0: i32, %arg1: i32) -> (i32, i32, i32, i32) {
    %c0_i32 = arith.constant 0 : i32
    %c0_i32_0 = arith.constant 0 : i32
    %c0_i32_1 = arith.constant 0 : i32
    %c0_i32_2 = arith.constant 0 : i32
    return %arg0, %c0_i32, %c0_i32_0, %c0_i32_1 : i32, i32, i32, i32
  }
  func.func @transform_1(%arg0: i32, %arg1: i32) -> (i32, i32, i32, i32) {
    %c0_i32 = arith.constant 0 : i32
    %c0_i32_0 = arith.constant 0 : i32
    %c0_i32_1 = arith.constant 0 : i32
    %c0_i32_2 = arith.constant 0 : i32
    %c0_i32_3 = arith.constant 0 : i32
    return %c0_i32, %c0_i32_0, %c0_i32_1, %c0_i32_2 : i32, i32, i32, i32
  }
  func.func @transform_2(%arg0: i32, %arg1: i32) -> (i32, i32) {
    %c0_i32 = arith.constant 0 : i32
    %c0_i32_0 = arith.constant 0 : i32
    %c0_i32_1 = arith.constant 0 : i32
    return %c0_i32, %c0_i32_0 : i32, i32
  }
  func.func @transform_3(%arg0: i32, %arg1: i32) -> (i32, i32, i32) {
    %c0_i32 = arith.constant 0 : i32
    %c0_i32_0 = arith.constant 0 : i32
    return %arg0, %arg1, %c0_i32 : i32, i32, i32
  }
}

</mosaic_0001>

<llo_original>
// kernel: conv_layer.1
$region0: #{conv_layer.1}
  #allocation0 [shape = 'u32[]', space=smem, size = 0x4, offset = 0x4, fixed_abs, tag = 'smem constant byte address 0x4 - core index']
  #allocation1 [shape = 'u32[144,128]{1,0:T(1,128)}', space=vmem, size = 0x12000, scoped, tag = 'internal scratch']
  #allocation2 [shape = 'f32[64,128]{1,0:T(8,128)}', space=vmem, size = 0x8000, scoped, tag = 'scratch operand']
  %s0 = inlined_call_operand.vmem [shape: f32[18,2,9,8], index: 0, kind: input, shape index: {}]
  %s1 = inlined_call_operand.vmem [shape: f32[3,2,8,128], index: 1, kind: input, shape index: {}]
  %s2 = inlined_call_operand.vmem [shape: f32[1,128], index: 2, kind: input, shape index: {}]
  %s3 = inlined_call_operand.vmem [shape: f32[2,64,128], index: 3, kind: output, shape index: {}]
  %s4 = sld [smem:[#allocation0]]
  $region45: #{conv_layer.1} parent=0
    _
  %s6 = ssub.s32 1, %s4
  %s7 = scalar_select 0, %s6, %s4
  loop: start=0, step=1, limit=4
  $region2: #{conv_layer.1} parent=0 // loop_pre_header
    _
  $region3: #{conv_layer.1} parent=0 // loop_header
    %s9 = sphi 0, %s13
    %p10 = scmp.ge.s32.totalorder %s9, 4
    %s16 = sphi 0, %s28
    %s17 = sphi 0, %s24
    %s18 = sphi 0, %s16
    %s19 = sphi 0, %s17
    %s20 = sphi 0, %s18
    %s21 = sphi 0, %s19
    %s31 = sphi 0, %s33
    %s34 = sphi 0, %s31
    %s35 = sphi 0, %s34
    %s51 = sphi 0, %s35
    %s55 = sphi 0, %s55
    %s57 = sphi 0, %s55
    %s58 = sphi 0, %s57
    %s72 = sphi 0, %s58
    %s76 = sphi 0, %s76
    %s78 = sphi 0, %s76
    %s79 = sphi 0, %s78
    %s93 = sphi 0, %s79
    %s101 = sphi 0, %s103
    %s104 = sphi 0, %s101
    %s105 = sphi 0, %s104
    %s121 = sphi 0, %s105
  $region4: #{conv_layer.1} parent=0 // loop_header_branch
    %12 = sbr.rel (%p10) target = $region8
  $region5: #{conv_layer.1} parent=0 // loop_body
    %s14 = ssub.s32 %s9, 1
    %s15 = ssub.s32 %s9, 2
    %s22 = sadd.s32 1, %s17
    %p23 = scmp.ge.s32.totalorder %s22, 1
    %s24 = scalar_select %p23, 0, %s22
    %s25 = sadd.s32 1, %s16
    %s26 = scalar_select %p23, %s25, %s16
    %p27 = scmp.ge.s32.totalorder %s26, 2
    %s28 = scalar_select %p27, 0, %s26
    %s29 = ssub.s32 %s16, %s28
    %p30 = scmp.eq.s32.totalorder %s29, 0
    %s32 = sadd.s32 %s31, 1
    %s33 = scalar_select %p30, %s31, %s32
    %p36 = pneg %p30
    %p37 = scmp.eq.s32.totalorder %s9, 1
    %p38 = por %p36, %p37
    %p39 = scmp.ne.s32.totalorder %s31, %s34
    %p40 = scmp.eq.s32.totalorder %s9, 0
    %p41 = por %p39, %p40
    %p42 = scmp.ne.s32.totalorder %s31, %s34
    %p43 = scmp.eq.s32.totalorder %s14, 1
    %p44 = por %p42, %p43
    %p45 = scmp.ne.s32.totalorder %s34, %s35
    %p46 = scmp.eq.s32.totalorder %s14, 0
    %p47 = por %p45, %p46
    %p48 = scmp.ne.s32.totalorder %s34, %s35
    %p49 = scmp.eq.s32.totalorder %s15, 1
    %p50 = por %p48, %p49
    %p52 = scmp.ne.s32.totalorder %s35, %s51
    %p53 = scmp.eq.s32.totalorder %s15, 0
    %p54 = por %p52, %p53
    %s56 = sadd.s32 %s55, 1
    %p59 = scmp.eq.s32.totalorder %s9, 1
    %p60 = scmp.ne.s32.totalorder %s55, %s57
    %p61 = scmp.eq.s32.totalorder %s9, 0
    %p62 = por %p60, %p61
    %p63 = scmp.ne.s32.totalorder %s55, %s57
    %p64 = scmp.eq.s32.totalorder %s14, 1
    %p65 = por %p63, %p64
    %p66 = scmp.ne.s32.totalorder %s57, %s58
    %p67 = scmp.eq.s32.totalorder %s14, 0
    %p68 = por %p66, %p67
    %p69 = scmp.ne.s32.totalorder %s57, %s58
    %p70 = scmp.eq.s32.totalorder %s15, 1
    %p71 = por %p69, %p70
    %p73 = scmp.ne.s32.totalorder %s58, %s72
    %p74 = scmp.eq.s32.totalorder %s15, 0
    %p75 = por %p73, %p74
    %s77 = sadd.s32 %s76, 1
    %p80 = scmp.eq.s32.totalorder %s9, 1
    %p81 = scmp.ne.s32.totalorder %s76, %s78
    %p82 = scmp.eq.s32.totalorder %s9, 0
    %p83 = por %p81, %p82
    %p84 = scmp.ne.s32.totalorder %s76, %s78
    %p85 = scmp.eq.s32.totalorder %s14, 1
    %p86 = por %p84, %p85
    %p87 = scmp.ne.s32.totalorder %s78, %s79
    %p88 = scmp.eq.s32.totalorder %s14, 0
    %p89 = por %p87, %p88
    %p90 = scmp.ne.s32.totalorder %s78, %s79
    %p91 = scmp.eq.s32.totalorder %s15, 1
    %p92 = por %p90, %p91
    %p94 = scmp.ne.s32.totalorder %s79, %s93
    %p95 = scmp.eq.s32.totalorder %s15, 0
    %p96 = por %p94, %p95
    %s97 = ssub.s32 %s16, %s28
    %s98 = ssub.s32 %s17, %s24
    %s99 = sor.u32 %s97, %s98
    %p100 = scmp.eq.s32.totalorder %s99, 0
    %s102 = sadd.s32 %s101, 1
    %s103 = scalar_select %p100, %s101, %s102
    %p106 = pneg %p100
    %p107 = scmp.eq.s32.totalorder %s9, 1
    %p108 = por %p106, %p107
    %p109 = scmp.ne.s32.totalorder %s101, %s104
    %p110 = scmp.eq.s32.totalorder %s9, 0
    %p111 = por %p109, %p110
    %p112 = scmp.ne.s32.totalorder %s101, %s104
    %p113 = scmp.eq.s32.totalorder %s14, 1
    %p114 = por %p112, %p113
    %p115 = scmp.ne.s32.totalorder %s104, %s105
    %p116 = scmp.eq.s32.totalorder %s14, 0
    %p117 = por %p115, %p116
    %p118 = scmp.ne.s32.totalorder %s104, %s105
    %p119 = scmp.eq.s32.totalorder %s15, 1
    %p120 = por %p118, %p119
    %p122 = scmp.ne.s32.totalorder %s105, %s121
    %p123 = scmp.eq.s32.totalorder %s15, 0
    %p124 = por %p122, %p123
    %p125 = scmp.le.s32.totalorder 1, %s9
    %p126 = scmp.lt.s32.totalorder %s9, 3
    %p127 = pnand %p125, %p126
    %p128 = pneg %p127
    // Predicated region
    $region9: #{conv_layer.1} parent=5 // pred_check
      _
    $region10: #{conv_layer.1} parent=5 // pred_check_branch
      %130 = sbr.rel (%p127) target = $region12
    $region11: #{conv_layer.1} parent=5 // pred_region
      %s131 = ssub.s32 %s9, 1
      // Predicated region
      $region13: #{conv_layer.1} parent=11 // pred_check
        %p132 = pneg %p68
      $region14: #{conv_layer.1} parent=11 // pred_check_branch
        %134 = sbr.rel (%p132) target = $region16
      $region15: #{conv_layer.1} parent=11 // pred_region
        _
      $region16: #{conv_layer.1} parent=11 // pred_fallthru
        _
      // Predicated region
      $region17: #{conv_layer.1} parent=11 // pred_check
        %p135 = pneg %p89
      $region18: #{conv_layer.1} parent=11 // pred_check_branch
        %137 = sbr.rel (%p135) target = $region20
      $region19: #{conv_layer.1} parent=11 // pred_region
        _
      $region20: #{conv_layer.1} parent=11 // pred_fallthru
        _
    $region12: #{conv_layer.1} parent=5 // pred_fallthru
      _
    %p138 = scmp.lt.s32.totalorder %s9, 2
    // Predicated region
    $region21: #{conv_layer.1} parent=5 // pred_check
      %p139 = pneg %p138
    $region22: #{conv_layer.1} parent=5 // pred_check_branch
      %141 = sbr.rel (%p139) target = $region24
    $region23: #{conv_layer.1} parent=5 // pred_region
      // Predicated region
      $region25: #{conv_layer.1} parent=23 // pred_check
        %p142 = pneg %p41
      $region26: #{conv_layer.1} parent=23 // pred_check_branch
        %144 = sbr.rel (%p142) target = $region28
      $region27: #{conv_layer.1} parent=23 // pred_region
        %s145 = smul.u32 9, %s16
        %p146 = scmp.lt.s32.totalorder %s145, 17
        %s147 = scalar_select %p146, %s145, 17
        %s148 = smul.addr %s147, 4
        %s149 = smul.addr %s148, 8
        %s150 = scalar_lea.vmem %s0, %s149
        %s151 = smul.u32 9, %s16
      $region28: #{conv_layer.1} parent=23 // pred_fallthru
        _
    $region24: #{conv_layer.1} parent=5 // pred_fallthru
      _
    %p152 = scmp.le.s32.totalorder 1, %s9
    %p153 = scmp.lt.s32.totalorder %s9, 3
    %p154 = pnand %p152, %p153
    %p155 = pneg %p154
    // Predicated region
    $region29: #{conv_layer.1} parent=5 // pred_check
      _
    $region30: #{conv_layer.1} parent=5 // pred_check_branch
      %157 = sbr.rel (%p154) target = $region32
    $region31: #{conv_layer.1} parent=5 // pred_region
      %s158 = ssub.s32 %s9, 1
      %s159 = smul.u32 9, %s18
      %p160 = scmp.lt.s32.totalorder %s159, 17
      %s161 = scalar_select %p160, %s159, 17
      %s162 = smul.addr %s161, 4
      %s163 = smul.addr %s162, 8
      %s164 = scalar_lea.vmem %s0, %s163
      %p165 = pneg %p47
      %p166 = pneg %p44
      %p167 = pneg %p68
      %p168 = pneg %p65
      %p169 = pneg %p89
      %p170 = pneg %p86
      %p171 = pneg %p117
      %p172 = pneg %p114
      %s173 = smul.u32 8, %s19
      %p174 = scmp.lt.s32.totalorder %s18, 1
      %s175 = scalar_select %p174, %s18, 1
      %p176 = scmp.lt.s32.totalorder %s173, 7
      %s177 = scalar_select %p176, %s173, 7
      %s178 = smul.addr %s175, 8
      %s179 = sadd.s32 %s177, %s178
      %s180 = smul.addr %s179, 8
      %s181 = scalar_lea.vmem %s3, %s180
      %s182 = smul.u32 9, %s18
      %p183 = scmp.lt.s32.totalorder %s182, 17
      %s184 = scalar_select %p183, %s182, 17
      %s185 = smul.addr %s184, 4
      %s186 = smul.addr %s185, 8
      %s187 = scalar_lea.vmem %s0, %s186
      %s188 = smul.u32 9, %s18
      %s189 = smul.u32 8, %s19
      %p190 = scmp.lt.s32.totalorder %s18, 1
      %s191 = scalar_select %p190, %s18, 1
      %p192 = scmp.lt.s32.totalorder %s189, 7
      %s193 = scalar_select %p192, %s189, 7
      %s194 = smul.addr %s191, 8
      %s195 = sadd.s32 %s193, %s194
      %s196 = smul.addr %s195, 8
      %s197 = scalar_lea.vmem %s3, %s196
      %s198 = smul.u32 8, %s19
      %s199 = smul.u32 %s19, 8
      %s200 = smul.u32 %s199, 32
      %s201 = scalar_lea.vmem %s187, %s200
      %v202 = vld [vmem:[%s201] sm:$0xff]
      %v203 = vld [vmem:[%s201 + $0x20] sm:$0xff]
      %v204 = vld [vmem:[%s201 + $0x40] sm:$0xff]
      %v205 = vld [vmem:[%s201 + $0x60] sm:$0xff]
      %v206 = vld [vmem:[%s201 + $0x80] sm:$0xff]
      %v207 = vld [vmem:[%s201 + $0xa0] sm:$0xff]
      %v208 = vld [vmem:[%s201 + $0xc0] sm:$0xff]
      %v209 = vld [vmem:[%s201 + $0xe0] sm:$0xff]
      %v210 = vld [vmem:[%s1] sm:$0xff]
      %vm211 = vcmask 64512
      %v213 = vsel %vm211, %v202, 0
      %v216 = vsel %vm211, %v203, 0
      %v219 = vsel %vm211, %v204, 0
      %v222 = vsel %vm211, %v205, 0
      %v225 = vsel %vm211, %v206, 0
      %v228 = vsel %vm211, %v207, 0
      %v231 = vsel %vm211, %v208, 0
      %v234 = vsel %vm211, %v209, 0
      %236 = vmatprep.subr.mxu0 0.0
      %237 = vmatpush1.msra.mxu0 %v210
      %238 = vmatprep.subr.mxu0 0.0
      %239 = vmatpush1.msra.mxu0 0.0
      %240 = vmatprep.subr.mxu0 0.0
      %241 = vmatpush1.msra.mxu0 0.0
      %242 = vmatprep.subr.mxu0 0.0
      %243 = vmatpush1.msra.mxu0 0.0
      %244 = vmatprep.subr.mxu0 0.0
      %245 = vmatpush1.msra.mxu0 0.0
      %246 = vmatprep.subr.mxu0 0.0
      %247 = vmatpush1.msra.mxu0 0.0
      %248 = vmatprep.subr.mxu0 0.0
      %249 = vmatpush1.msra.mxu0 0.0
      %250 = vmatprep.subr.mxu0 0.0
      %251 = vmatpush1.msra.mxu0 0.0
      %252 = vmatprep.subr.mxu0 0.0
      %253 = vmatpush1.msra.mxu0 0.0
      %254 = vmatprep.subr.mxu0 0.0
      %255 = vmatpush1.msra.mxu0 0.0
      %256 = vmatprep.subr.mxu0 0.0
      %257 = vmatpush1.msra.mxu0 0.0
      %258 = vmatprep.subr.mxu0 0.0
      %259 = vmatpush1.msra.mxu0 0.0
      %260 = vmatprep.subr.mxu0 0.0
      %261 = vmatpush1.msra.mxu0 0.0
      %262 = vmatprep.subr.mxu0 0.0
      %263 = vmatpush1.msra.mxu0 0.0
      %264 = vmatprep.subr.mxu0 0.0
      %265 = vmatpush1.msra.mxu0 0.0
      %266 = vmatprep.subr.mxu0 0.0
      %267 = vmatpush1.msra.mxu0 0.0
      %268 = vmatprep.subr.mxu0 0.0
      %269 = vmatpush1.msra.mxu0 0.0
      %270 = vmatprep.subr.mxu0 0.0
      %271 = vmatpush1.msra.mxu0 0.0
      %272 = vmatprep.subr.mxu0 0.0
      %273 = vmatpush1.msra.mxu0 0.0
      %274 = vmatprep.subr.mxu0 0.0
      %275 = vmatpush1.msra.mxu0 0.0
      %276 = vmatprep.subr.mxu0 0.0
      %277 = vmatpush1.msra.mxu0 0.0
      %278 = vmatprep.subr.mxu0 0.0
      %279 = vmatpush1.msra.mxu0 0.0
      %280 = vmatprep.subr.mxu0 0.0
      %281 = vmatpush1.msra.mxu0 0.0
      %282 = vmatprep.subr.mxu0 0.0
      %283 = vmatpush1.msra.mxu0 0.0
      %284 = vmatprep.subr.mxu0 0.0
      %285 = vmatpush1.msra.mxu0 0.0
      %286 = vmatprep.subr.mxu0 0.0
      %287 = vmatpush1.msra.mxu0 0.0
      %288 = vmatprep.subr.mxu0 0.0
      %289 = vmatpush1.msra.mxu0 0.0
      %290 = vmatprep.subr.mxu0 0.0
      %291 = vmatpush1.msra.mxu0 0.0
      %292 = vmatprep.subr.mxu0 0.0
      %293 = vmatpush1.msra.mxu0 0.0
      %294 = vmatprep.subr.mxu0 0.0
      %295 = vmatpush1.msra.mxu0 0.0
      %296 = vmatprep.subr.mxu0 0.0
      %297 = vmatpush1.msra.mxu0 0.0
      %298 = vmatprep.subr.mxu0 0.0
      %299 = vmatpush1.msra.mxu0 0.0
      %300 = vmatprep.mubr.f32.mxu0 0.0
      %301 = vmatmul.mubr.f32.gmra.mrb[0].mxu0 %v213
      %v302 = vpop.f32.mrb[0].mxu0
      %v303 = vadd.f32 0.0, %v302
      %v304 = vpop.f32.mrb[0].mxu0
      %305 = vmatprep.mubr.f32.mxu0 0.0
      %306 = vmatmul.mubr.f32.gmra.mrb[0].mxu0 %v216
      %v307 = vpop.f32.mrb[0].mxu0
      %v308 = vadd.f32 0.0, %v307
      %v309 = vpop.f32.mrb[0].mxu0
      %310 = vmatprep.mubr.f32.mxu0 0.0
      %311 = vmatmul.mubr.f32.gmra.mrb[0].mxu0 %v219
      %v312 = vpop.f32.mrb[0].mxu0
      %v313 = vadd.f32 0.0, %v312
      %v314 = vpop.f32.mrb[0].mxu0
      %315 = vmatprep.mubr.f32.mxu0 0.0
      %316 = vmatmul.mubr.f32.gmra.mrb[0].mxu0 %v222
      %v317 = vpop.f32.mrb[0].mxu0
      %v318 = vadd.f32 0.0, %v317
      %v319 = vpop.f32.mrb[0].mxu0
      %320 = vmatprep.mubr.f32.mxu0 0.0
      %321 = vmatmul.mubr.f32.gmra.mrb[0].mxu0 %v225
      %v322 = vpop.f32.mrb[0].mxu0
      %v323 = vadd.f32 0.0, %v322
      %v324 = vpop.f32.mrb[0].mxu0
      %325 = vmatprep.mubr.f32.mxu0 0.0
      %326 = vmatmul.mubr.f32.gmra.mrb[0].mxu0 %v228
      %v327 = vpop.f32.mrb[0].mxu0
      %v328 = vadd.f32 0.0, %v327
      %v329 = vpop.f32.mrb[0].mxu0
      %330 = vmatprep.mubr.f32.mxu0 0.0
      %331 = vmatmul.mubr.f32.gmra.mrb[0].mxu0 %v231
      %v332 = vpop.f32.mrb[0].mxu0
      %v333 = vadd.f32 0.0, %v332
      %v334 = vpop.f32.mrb[0].mxu0
      %335 = vmatprep.mubr.f32.mxu0 0.0
      %336 = vmatmul.mubr.f32.gmra.mrb[0].mxu0 %v234
      %v337 = vpop.f32.mrb[0].mxu0
      %v338 = vadd.f32 0.0, %v337
      %v339 = vpop.f32.mrb[0].mxu0
      %340 = vdwg.mxu0
      %341 = vst [vmem:[#allocation2] sm:$0xff] %v303
      %342 = vst [vmem:[#allocation2 + $0x8] sm:$0xff] %v308
      %343 = vst [vmem:[#allocation2 + $0x10] sm:$0xff] %v313
      %344 = vst [vmem:[#allocation2 + $0x18] sm:$0xff] %v318
      %345 = vst [vmem:[#allocation2 + $0x20] sm:$0xff] %v323
      %346 = vst [vmem:[#allocation2 + $0x28] sm:$0xff] %v328
      %347 = vst [vmem:[#allocation2 + $0x30] sm:$0xff] %v333
      %348 = vst [vmem:[#allocation2 + $0x38] sm:$0xff] %v338
      %v349 = vld [vmem:[%s201 + $0x1] sm:$0xff]
      %v350 = vld [vmem:[%s201 + $0x21] sm:$0xff]
      %v351 = vld [vmem:[%s201 + $0x41] sm:$0xff]
      %v352 = vld [vmem:[%s201 + $0x61] sm:$0xff]
      %v353 = vld [vmem:[%s201 + $0x81] sm:$0xff]
      %v354 = vld [vmem:[%s201 + $0xa1] sm:$0xff]
      %v355 = vld [vmem:[%s201 + $0xc1] sm:$0xff]
      %v356 = vld [vmem:[%s201 + $0xe1] sm:$0xff]
      %s357 = scalar_lea.vmem %s1, 8
      %v358 = vld [vmem:[%s357] sm:$0xff]
      %v360 = vsel %vm211, %v349, 0
      %v363 = vsel %vm211, %v350, 0
      %v366 = vsel %vm211, %v351, 0
      %v369 = vsel %vm211, %v352, 0
      %v372 = vsel %vm211, %v353, 0
      %v375 = vsel %vm211, %v354, 0
      %v378 = vsel %vm211, %v355, 0
      %v381 = vsel %vm211, %v356, 0
      %383 = vmatprep.subr.mxu0 0.0
      %384 = vmatpush1.msra.mxu0 %v358
      %385 = vmatprep.subr.mxu0 0.0
      %386 = vmatpush1.msra.mxu0 0.0
      %387 = vmatprep.subr.mxu0 0.0
      %388 = vmatpush1.msra.mxu0 0.0
      %389 = vmatprep.subr.mxu0 0.0
      %390 = vmatpush1.msra.mxu0 0.0
      %391 = vmatprep.subr.mxu0 0.0
      %392 = vmatpush1.msra.mxu0 0.0
      %393 = vmatprep.subr.mxu0 0.0
      %394 = vmatpush1.msra.mxu0 0.0
      %395 = vmatprep.subr.mxu0 0.0
      %396 = vmatpush1.msra.mxu0 0.0
      %397 = vmatprep.subr.mxu0 0.0
      %398 = vmatpush1.msra.mxu0 0.0
      %399 = vmatprep.subr.mxu0 0.0
      %400 = vmatpush1.msra.mxu0 0.0
      %401 = vmatprep.subr.mxu0 0.0
      %402 = vmatpush1.msra.mxu0 0.0
      %403 = vmatprep.subr.mxu0 0.0
      %404 = vmatpush1.msra.mxu0 0.0
      %405 = vmatprep.subr.mxu0 0.0
      %406 = vmatpush1.msra.mxu0 0.0
      %407 = vmatprep.subr.mxu0 0.0
      %408 = vmatpush1.msra.mxu0 0.0
      %409 = vmatprep.subr.mxu0 0.0
      %410 = vmatpush1.msra.mxu0 0.0
      %411 = vmatprep.subr.mxu0 0.0
      %412 = vmatpush1.msra.mxu0 0.0
      %413 = vmatprep.subr.mxu0 0.0
      %414 = vmatpush1.msra.mxu0 0.0
      %415 = vmatprep.subr.mxu0 0.0
      %416 = vmatpush1.msra.mxu0 0.0
      %417 = vmatprep.subr.mxu0 0.0
      %418 = vmatpush1.msra.mxu0 0.0
      %419 = vmatprep.subr.mxu0 0.0
      %420 = vmatpush1.msra.mxu0 0.0
      %421 = vmatprep.subr.mxu0 0.0
      %422 = vmatpush1.msra.mxu0 0.0
      %423 = vmatprep.subr.mxu0 0.0
      %424 = vmatpush1.msra.mxu0 0.0
      %425 = vmatprep.subr.mxu0 0.0
      %426 = vmatpush1.msra.mxu0 0.0
      %427 = vmatprep.subr.mxu0 0.0
      %428 = vmatpush1.msra.mxu0 0.0
      %429 = vmatprep.subr.mxu0 0.0
      %430 = vmatpush1.msra.mxu0 0.0
      %431 = vmatprep.subr.mxu0 0.0
      %432 = vmatpush1.msra.mxu0 0.0
      %433 = vmatprep.subr.mxu0 0.0
      %434 = vmatpush1.msra.mxu0 0.0
      %435 = vmatprep.subr.mxu0 0.0
      %436 = vmatpush1.msra.mxu0 0.0
      %437 = vmatprep.subr.mxu0 0.0
      %438 = vmatpush1.msra.mxu0 0.0
      %439 = vmatprep.subr.mxu0 0.0
      %440 = vmatpush1.msra.mxu0 0.0
      %441 = vmatprep.subr.mxu0 0.0
      %442 = vmatpush1.msra.mxu0 0.0
      %443 = vmatprep.subr.mxu0 0.0
      %444 = vmatpush1.msra.mxu0 0.0
      %445 = vmatprep.subr.mxu0 0.0
      %446 = vmatpush1.msra.mxu0 0.0
      %447 = vmatprep.mubr.f32.mxu0 0.0
      %448 = vmatmul.mubr.f32.gmra.mrb[0].mxu0 %v360
      %v449 = vpop.f32.mrb[0].mxu0
      %v450 = vadd.f32 0.0, %v449
      %v451 = vpop.f32.mrb[0].mxu0
      %452 = vmatprep.mubr.f32.mxu0 0.0
      %453 = vmatmul.mubr.f32.gmra.mrb[0].mxu0 %v363
      %v454 = vpop.f32.mrb[0].mxu0
      %v455 = vadd.f32 0.0, %v454
      %v456 = vpop.f32.mrb[0].mxu0
      %457 = vmatprep.mubr.f32.mxu0 0.0
      %458 = vmatmul.mubr.f32.gmra.mrb[0].mxu0 %v366
      %v459 = vpop.f32.mrb[0].mxu0
      %v460 = vadd.f32 0.0, %v459
      %v461 = vpop.f32.mrb[0].mxu0
      %462 = vmatprep.mubr.f32.mxu0 0.0
      %463 = vmatmul.mubr.f32.gmra.mrb[0].mxu0 %v369
      %v464 = vpop.f32.mrb[0].mxu0
      %v465 = vadd.f32 0.0, %v464
      %v466 = vpop.f32.mrb[0].mxu0
      %467 = vmatprep.mubr.f32.mxu0 0.0
      %468 = vmatmul.mubr.f32.gmra.mrb[0].mxu0 %v372
      %v469 = vpop.f32.mrb[0].mxu0
      %v470 = vadd.f32 0.0, %v469
      %v471 = vpop.f32.mrb[0].mxu0
      %472 = vmatprep.mubr.f32.mxu0 0.0
      %473 = vmatmul.mubr.f32.gmra.mrb[0].mxu0 %v375
      %v474 = vpop.f32.mrb[0].mxu0
      %v475 = vadd.f32 0.0, %v474
      %v476 = vpop.f32.mrb[0].mxu0
      %477 = vmatprep.mubr.f32.mxu0 0.0
      %478 = vmatmul.mubr.f32.gmra.mrb[0].mxu0 %v378
      %v479 = vpop.f32.mrb[0].mxu0
      %v480 = vadd.f32 0.0, %v479
      %v481 = vpop.f32.mrb[0].mxu0
      %482 = vmatprep.mubr.f32.mxu0 0.0
      %483 = vmatmul.mubr.f32.gmra.mrb[0].mxu0 %v381
      %v484 = vpop.f32.mrb[0].mxu0
      %v485 = vadd.f32 0.0, %v484
      %v486 = vpop.f32.mrb[0].mxu0
      %487 = vdwg.mxu0
      %v488 = vld [vmem:[#allocation2] sm:$0xff]
      %v489 = vld [vmem:[#allocation2 + $0x8] sm:$0xff]
      %v490 = vld [vmem:[#allocation2 + $0x10] sm:$0xff]
      %v491 = vld [vmem:[#allocation2 + $0x18] sm:$0xff]
      %v492 = vld [vmem:[#allocation2 + $0x20] sm:$0xff]
      %v493 = vld [vmem:[#allocation2 + $0x28] sm:$0xff]
      %v494 = vld [vmem:[#allocation2 + $0x30] sm:$0xff]
      %v495 = vld [vmem:[#allocation2 + $0x38] sm:$0xff]
      %v496 = vadd.f32 %v488, %v450
      %v497 = vadd.f32 %v489, %v455
      %v498 = vadd.f32 %v490, %v460
      %v499 = vadd.f32 %v491, %v465
      %v500 = vadd.f32 %v492, %v470
      %v501 = vadd.f32 %v493, %v475
      %v502 = vadd.f32 %v494, %v480
      %v503 = vadd.f32 %v495, %v485
      %504 = vst [vmem:[#allocation2] sm:$0xff] %v496
      %505 = vst [vmem:[#allocation2 + $0x8] sm:$0xff] %v497
      %506 = vst [vmem:[#allocation2 + $0x10] sm:$0xff] %v498
      %507 = vst [vmem:[#allocation2 + $0x18] sm:$0xff] %v499
      %508 = vst [vmem:[#allocation2 + $0x20] sm:$0xff] %v500
      %509 = vst [vmem:[#allocation2 + $0x28] sm:$0xff] %v501
      %510 = vst [vmem:[#allocation2 + $0x30] sm:$0xff] %v502
      %511 = vst [vmem:[#allocation2 + $0x38] sm:$0xff] %v503
      %s512 = sadd.s32 16, %s200
      %s513 = scalar_lea.vmem %s187, %s512
      %v514 = vld [vmem:[%s513] sm:$0xff]
      %v515 = vld [vmem:[%s513 + $0x20] sm:$0xff]
      %v516 = vld [vmem:[%s513 + $0x40] sm:$0xff]
      %v517 = vld [vmem:[%s513 + $0x60] sm:$0xff]
      %v518 = vld [vmem:[%s513 + $0x80] sm:$0xff]
      %v519 = vld [vmem:[%s513 + $0xa0] sm:$0xff]
      %v520 = vld [vmem:[%s513 + $0xc0] sm:$0xff]
      %v521 = vld [vmem:[%s513 + $0xe0] sm:$0xff]
      %s522 = scalar_lea.vmem %s1, 16
      %v523 = vld [vmem:[%s522] sm:$0xff]
      %v525 = vsel %vm211, %v514, 0
      %v528 = vsel %vm211, %v515, 0
      %v531 = vsel %vm211, %v516, 0
      %v534 = vsel %vm211, %v517, 0
      %v537 = vsel %vm211, %v518, 0
      %v540 = vsel %vm211, %v519, 0
      %v543 = vsel %vm211, %v520, 0
      %v546 = vsel %vm211, %v521, 0
      %548 = vmatprep.subr.mxu0 0.0
      %549 = vmatpush1.msra.mxu0 %v523
      %550 = vmatprep.subr.mxu0 0.0
      %551 = vmatpush1.msra.mxu0 0.0
      %552 = vmatprep.subr.mxu0 0.0
      %553 = vmatpush1.msra.mxu0 0.0
      %554 = vmatprep.subr.mxu0 0.0
      %555 = vmatpush1.msra.mxu0 0.0
      %556 = vmatprep.subr.mxu0 0.0
      %557 = vmatpush1.msra.mxu0 0.0
      %558 = vmatprep.subr.mxu0 0.0
      %559 = vmatpush1.msra.mxu0 0.0
      %560 = vmatprep.subr.mxu0 0.0
      %561 = vmatpush1.msra.mxu0 0.0
      %562 = vmatprep.subr.mxu0 0.0
      %563 = vmatpush1.msra.mxu0 0.0
      %564 = vmatprep.subr.mxu0 0.0
      %565 = vmatpush1.msra.mxu0 0.0
      %566 = vmatprep.subr.mxu0 0.0
      %567 = vmatpush1.msra.mxu0 0.0
      %568 = vmatprep.subr.mxu0 0.0
      %569 = vmatpush1.msra.mxu0 0.0
      %570 = vmatprep.subr.mxu0 0.0
      %571 = vmatpush1.msra.mxu0 0.0
      %572 = vmatprep.subr.mxu0 0.0
      %573 = vmatpush1.msra.mxu0 0.0
      %574 = vmatprep.subr.mxu0 0.0
      %575 = vmatpush1.msra.mxu0 0.0
      %576 = vmatprep.subr.mxu0 0.0
      %577 = vmatpush1.msra.mxu0 0.0
      %578 = vmatprep.subr.mxu0 0.0
      %579 = vmatpush1.msra.mxu0 0.0
      %580 = vmatprep.subr.mxu0 0.0
      %581 = vmatpush1.msra.mxu0 0.0
      %582 = vmatprep.subr.mxu0 0.0
      %583 = vmatpush1.msra.mxu0 0.0
      %584 = vmatprep.subr.mxu0 0.0
      %585 = vmatpush1.msra.mxu0 0.0
      %586 = vmatprep.subr.mxu0 0.0
      %587 = vmatpush1.msra.mxu0 0.0
      %588 = vmatprep.subr.mxu0 0.0
      %589 = vmatpush1.msra.mxu0 0.0
      %590 = vmatprep.subr.mxu0 0.0
      %591 = vmatpush1.msra.mxu0 0.0
      %592 = vmatprep.subr.mxu0 0.0
      %593 = vmatpush1.msra.mxu0 0.0
      %594 = vmatprep.subr.mxu0 0.0
      %595 = vmatpush1.msra.mxu0 0.0
      %596 = vmatprep.subr.mxu0 0.0
      %597 = vmatpush1.msra.mxu0 0.0
      %598 = vmatprep.subr.mxu0 0.0
      %599 = vmatpush1.msra.mxu0 0.0
      %600 = vmatprep.subr.mxu0 0.0
      %601 = vmatpush1.msra.mxu0 0.0
      %602 = vmatprep.subr.mxu0 0.0
      %603 = vmatpush1.msra.mxu0 0.0
      %604 = vmatprep.subr.mxu0 0.0
      %605 = vmatpush1.msra.mxu0 0.0
      %606 = vmatprep.subr.mxu0 0.0
      %607 = vmatpush1.msra.mxu0 0.0
      %608 = vmatprep.subr.mxu0 0.0
      %609 = vmatpush1.msra.mxu0 0.0
      %610 = vmatprep.subr.mxu0 0.0
      %611 = vmatpush1.msra.mxu0 0.0
      %612 = vmatprep.mubr.f32.mxu0 0.0
      %613 = vmatmul.mubr.f32.gmra.mrb[0].mxu0 %v525
      %v614 = vpop.f32.mrb[0].mxu0
      %v615 = vadd.f32 0.0, %v614
      %v616 = vpop.f32.mrb[0].mxu0
      %617 = vmatprep.mubr.f32.mxu0 0.0
      %618 = vmatmul.mubr.f32.gmra.mrb[0].mxu0 %v528
      %v619 = vpop.f32.mrb[0].mxu0
      %v620 = vadd.f32 0.0, %v619
      %v621 = vpop.f32.mrb[0].mxu0
      %622 = vmatprep.mubr.f32.mxu0 0.0
      %623 = vmatmul.mubr.f32.gmra.mrb[0].mxu0 %v531
      %v624 = vpop.f32.mrb[0].mxu0
      %v625 = vadd.f32 0.0, %v624
      %v626 = vpop.f32.mrb[0].mxu0
      %627 = vmatprep.mubr.f32.mxu0 0.0
      %628 = vmatmul.mubr.f32.gmra.mrb[0].mxu0 %v534
      %v629 = vpop.f32.mrb[0].mxu0
      %v630 = vadd.f32 0.0, %v629
      %v631 = vpop.f32.mrb[0].mxu0
      %632 = vmatprep.mubr.f32.mxu0 0.0
      %633 = vmatmul.mubr.f32.gmra.mrb[0].mxu0 %v537
      %v634 = vpop.f32.mrb[0].mxu0
      %v635 = vadd.f32 0.0, %v634
      %v636 = vpop.f32.mrb[0].mxu0
      %637 = vmatprep.mubr.f32.mxu0 0.0
      %638 = vmatmul.mubr.f32.gmra.mrb[0].mxu0 %v540
      %v639 = vpop.f32.mrb[0].mxu0
      %v640 = vadd.f32 0.0, %v639
      %v641 = vpop.f32.mrb[0].mxu0
      %642 = vmatprep.mubr.f32.mxu0 0.0
      %643 = vmatmul.mubr.f32.gmra.mrb[0].mxu0 %v543
      %v644 = vpop.f32.mrb[0].mxu0
      %v645 = vadd.f32 0.0, %v644
      %v646 = vpop.f32.mrb[0].mxu0
      %647 = vmatprep.mubr.f32.mxu0 0.0
      %648 = vmatmul.mubr.f32.gmra.mrb[0].mxu0 %v546
      %v649 = vpop.f32.mrb[0].mxu0
      %v650 = vadd.f32 0.0, %v649
      %v651 = vpop.f32.mrb[0].mxu0
      %652 = vdwg.mxu0
      %v653 = vld [vmem:[#allocation2] sm:$0xff]
      %v654 = vld [vmem:[#allocation2 + $0x8] sm:$0xff]
      %v655 = vld [vmem:[#allocation2 + $0x10] sm:$0xff]
      %v656 = vld [vmem:[#allocation2 + $0x18] sm:$0xff]
      %v657 = vld [vmem:[#allocation2 + $0x20] sm:$0xff]
      %v658 = vld [vmem:[#allocation2 + $0x28] sm:$0xff]
      %v659 = vld [vmem:[#allocation2 + $0x30] sm:$0xff]
      %v660 = vld [vmem:[#allocation2 + $0x38] sm:$0xff]
      %v661 = vadd.f32 %v653, %v615
      %v662 = vadd.f32 %v654, %v620
      %v663 = vadd.f32 %v655, %v625
      %v664 = vadd.f32 %v656, %v630
      %v665 = vadd.f32 %v657, %v635
      %v666 = vadd.f32 %v658, %v640
      %v667 = vadd.f32 %v659, %v645
      %v668 = vadd.f32 %v660, %v650
      %669 = vst [vmem:[#allocation2] sm:$0xff] %v661
      %670 = vst [vmem:[#allocation2 + $0x8] sm:$0xff] %v662
      %671 = vst [vmem:[#allocation2 + $0x10] sm:$0xff] %v663
      %672 = vst [vmem:[#allocation2 + $0x18] sm:$0xff] %v664
      %673 = vst [vmem:[#allocation2 + $0x20] sm:$0xff] %v665
      %674 = vst [vmem:[#allocation2 + $0x28] sm:$0xff] %v666
      %675 = vst [vmem:[#allocation2 + $0x30] sm:$0xff] %v667
      %676 = vst [vmem:[#allocation2 + $0x38] sm:$0xff] %v668
      %v677 = vld [vmem:[%s513 + $0x1] sm:$0xff]
      %v678 = vld [vmem:[%s513 + $0x21] sm:$0xff]
      %v679 = vld [vmem:[%s513 + $0x41] sm:$0xff]
      %v680 = vld [vmem:[%s513 + $0x61] sm:$0xff]
      %v681 = vld [vmem:[%s513 + $0x81] sm:$0xff]
      %v682 = vld [vmem:[%s513 + $0xa1] sm:$0xff]
      %v683 = vld [vmem:[%s513 + $0xc1] sm:$0xff]
      %v684 = vld [vmem:[%s513 + $0xe1] sm:$0xff]
      %s685 = scalar_lea.vmem %s1, 24
      %v686 = vld [vmem:[%s685] sm:$0xff]
      %v688 = vsel %vm211, %v677, 0
      %v691 = vsel %vm211, %v678, 0
      %v694 = vsel %vm211, %v679, 0
      %v697 = vsel %vm211, %v680, 0
      %v700 = vsel %vm211, %v681, 0
      %v703 = vsel %vm211, %v682, 0
      %v706 = vsel %vm211, %v683, 0
      %v709 = vsel %vm211, %v684, 0
      %711 = vmatprep.subr.mxu0 0.0
      %712 = vmatpush1.msra.mxu0 %v686
      %713 = vmatprep.subr.mxu0 0.0
      %714 = vmatpush1.msra.mxu0 0.0
      %715 = vmatprep.subr.mxu0 0.0
      %716 = vmatpush1.msra.mxu0 0.0
      %717 = vmatprep.subr.mxu0 0.0
      %718 = vmatpush1.msra.mxu0 0.0
      %719 = vmatprep.subr.mxu0 0.0
      %720 = vmatpush1.msra.mxu0 0.0
      %721 = vmatprep.subr.mxu0 0.0
      %722 = vmatpush1.msra.mxu0 0.0
      %723 = vmatprep.subr.mxu0 0.0
      %724 = vmatpush1.msra.mxu0 0.0
      %725 = vmatprep.subr.mxu0 0.0
      %726 = vmatpush1.msra.mxu0 0.0
      %727 = vmatprep.subr.mxu0 0.0
      %728 = vmatpush1.msra.mxu0 0.0
      %729 = vmatprep.subr.mxu0 0.0
      %730 = vmatpush1.msra.mxu0 0.0
      %731 = vmatprep.subr.mxu0 0.0
      %732 = vmatpush1.msra.mxu0 0.0
      %733 = vmatprep.subr.mxu0 0.0
      %734 = vmatpush1.msra.mxu0 0.0
      %735 = vmatprep.subr.mxu0 0.0
      %736 = vmatpush1.msra.mxu0 0.0
      %737 = vmatprep.subr.mxu0 0.0
      %738 = vmatpush1.msra.mxu0 0.0
      %739 = vmatprep.subr.mxu0 0.0
      %740 = vmatpush1.msra.mxu0 0.0
      %741 = vmatprep.subr.mxu0 0.0
      %742 = vmatpush1.msra.mxu0 0.0
      %743 = vmatprep.subr.mxu0 0.0
      %744 = vmatpush1.msra.mxu0 0.0
      %745 = vmatprep.subr.mxu0 0.0
      %746 = vmatpush1.msra.mxu0 0.0
      %747 = vmatprep.subr.mxu0 0.0
      %748 = vmatpush1.msra.mxu0 0.0
      %749 = vmatprep.subr.mxu0 0.0
      %750 = vmatpush1.msra.mxu0 0.0
      %751 = vmatprep.subr.mxu0 0.0
      %752 = vmatpush1.msra.mxu0 0.0
      %753 = vmatprep.subr.mxu0 0.0
      %754 = vmatpush1.msra.mxu0 0.0
      %755 = vmatprep.subr.mxu0 0.0
      %756 = vmatpush1.msra.mxu0 0.0
      %757 = vmatprep.subr.mxu0 0.0
      %758 = vmatpush1.msra.mxu0 0.0
      %759 = vmatprep.subr.mxu0 0.0
      %760 = vmatpush1.msra.mxu0 0.0
      %761 = vmatprep.subr.mxu0 0.0
      %762 = vmatpush1.msra.mxu0 0.0
      %763 = vmatprep.subr.mxu0 0.0
      %764 = vmatpush1.msra.mxu0 0.0
      %765 = vmatprep.subr.mxu0 0.0
      %766 = vmatpush1.msra.mxu0 0.0
      %767 = vmatprep.subr.mxu0 0.0
      %768 = vmatpush1.msra.mxu0 0.0
      %769 = vmatprep.subr.mxu0 0.0
      %770 = vmatpush1.msra.mxu0 0.0
      %771 = vmatprep.subr.mxu0 0.0
      %772 = vmatpush1.msra.mxu0 0.0
      %773 = vmatprep.subr.mxu0 0.0
      %774 = vmatpush1.msra.mxu0 0.0
      %775 = vmatprep.mubr.f32.mxu0 0.0
      %776 = vmatmul.mubr.f32.gmra.mrb[0].mxu0 %v688
      %v777 = vpop.f32.mrb[0].mxu0
      %v778 = vadd.f32 0.0, %v777
      %v779 = vpop.f32.mrb[0].mxu0
      %780 = vmatprep.mubr.f32.mxu0 0.0
      %781 = vmatmul.mubr.f32.gmra.mrb[0].mxu0 %v691
      %v782 = vpop.f32.mrb[0].mxu0
      %v783 = vadd.f32 0.0, %v782
      %v784 = vpop.f32.mrb[0].mxu0
      %785 = vmatprep.mubr.f32.mxu0 0.0
      %786 = vmatmul.mubr.f32.gmra.mrb[0].mxu0 %v694
      %v787 = vpop.f32.mrb[0].mxu0
      %v788 = vadd.f32 0.0, %v787
      %v789 = vpop.f32.mrb[0].mxu0
      %790 = vmatprep.mubr.f32.mxu0 0.0
      %791 = vmatmul.mubr.f32.gmra.mrb[0].mxu0 %v697
      %v792 = vpop.f32.mrb[0].mxu0
      %v793 = vadd.f32 0.0, %v792
      %v794 = vpop.f32.mrb[0].mxu0
      %795 = vmatprep.mubr.f32.mxu0 0.0
      %796 = vmatmul.mubr.f32.gmra.mrb[0].mxu0 %v700
      %v797 = vpop.f32.mrb[0].mxu0
      %v798 = vadd.f32 0.0, %v797
      %v799 = vpop.f32.mrb[0].mxu0
      %800 = vmatprep.mubr.f32.mxu0 0.0
      %801 = vmatmul.mubr.f32.gmra.mrb[0].mxu0 %v703
      %v802 = vpop.f32.mrb[0].mxu0
      %v803 = vadd.f32 0.0, %v802
      %v804 = vpop.f32.mrb[0].mxu0
      %805 = vmatprep.mubr.f32.mxu0 0.0
      %806 = vmatmul.mubr.f32.gmra.mrb[0].mxu0 %v706
      %v807 = vpop.f32.mrb[0].mxu0
      %v808 = vadd.f32 0.0, %v807
      %v809 = vpop.f32.mrb[0].mxu0
      %810 = vmatprep.mubr.f32.mxu0 0.0
      %811 = vmatmul.mubr.f32.gmra.mrb[0].mxu0 %v709
      %v812 = vpop.f32.mrb[0].mxu0
      %v813 = vadd.f32 0.0, %v812
      %v814 = vpop.f32.mrb[0].mxu0
      %815 = vdwg.mxu0
      %v816 = vld [vmem:[#allocation2] sm:$0xff]
      %v817 = vld [vmem:[#allocation2 + $0x8] sm:$0xff]
      %v818 = vld [vmem:[#allocation2 + $0x10] sm:$0xff]
      %v819 = vld [vmem:[#allocation2 + $0x18] sm:$0xff]
      %v820 = vld [vmem:[#allocation2 + $0x20] sm:$0xff]
      %v821 = vld [vmem:[#allocation2 + $0x28] sm:$0xff]
      %v822 = vld [vmem:[#allocation2 + $0x30] sm:$0xff]
      %v823 = vld [vmem:[#allocation2 + $0x38] sm:$0xff]
      %v824 = vadd.f32 %v816, %v778
      %v825 = vadd.f32 %v817, %v783
      %v826 = vadd.f32 %v818, %v788
      %v827 = vadd.f32 %v819, %v793
      %v828 = vadd.f32 %v820, %v798
      %v829 = vadd.f32 %v821, %v803
      %v830 = vadd.f32 %v822, %v808
      %v831 = vadd.f32 %v823, %v813
      %832 = vst [vmem:[#allocation2] sm:$0xff] %v824
      %833 = vst [vmem:[#allocation2 + $0x8] sm:$0xff] %v825
      %834 = vst [vmem:[#allocation2 + $0x10] sm:$0xff] %v826
      %835 = vst [vmem:[#allocation2 + $0x18] sm:$0xff] %v827
      %836 = vst [vmem:[#allocation2 + $0x20] sm:$0xff] %v828
      %837 = vst [vmem:[#allocation2 + $0x28] sm:$0xff] %v829
      %838 = vst [vmem:[#allocation2 + $0x30] sm:$0xff] %v830
      %839 = vst [vmem:[#allocation2 + $0x38] sm:$0xff] %v831
      %s840 = sadd.s32 %s199, 1
      %s841 = smul.u32 %s840, 32
      %s842 = scalar_lea.vmem %s187, %s841
      %v843 = vld [vmem:[%s842] sm:$0xff]
      %v844 = vld [vmem:[%s842 + $0x20] sm:$0xff]
      %v845 = vld [vmem:[%s842 + $0x40] sm:$0xff]
      %v846 = vld [vmem:[%s842 + $0x60] sm:$0xff]
      %v847 = vld [vmem:[%s842 + $0x80] sm:$0xff]
      %v848 = vld [vmem:[%s842 + $0xa0] sm:$0xff]
      %v849 = vld [vmem:[%s842 + $0xc0] sm:$0xff]
      %v850 = vld [vmem:[%s842 + $0xe0] sm:$0xff]
      %s851 = scalar_lea.vmem %s1, 32
      %v852 = vld [vmem:[%s851] sm:$0xff]
      %v854 = vsel %vm211, %v843, 0
      %v857 = vsel %vm211, %v844, 0
      %v860 = vsel %vm211, %v845, 0
      %v863 = vsel %vm211, %v846, 0
      %v866 = vsel %vm211, %v847, 0
      %v869 = vsel %vm211, %v848, 0
      %v872 = vsel %vm211, %v849, 0
      %v875 = vsel %vm211, %v850, 0
      %877 = vmatprep.subr.mxu0 0.0
      %878 = vmatpush1.msra.mxu0 %v852
      %879 = vmatprep.subr.mxu0 0.0
      %880 = vmatpush1.msra.mxu0 0.0
      %881 = vmatprep.subr.mxu0 0.0
      %882 = vmatpush1.msra.mxu0 0.0
      %883 = vmatprep.subr.mxu0 0.0
      %884 = vmatpush1.msra.mxu0 0.0
      %885 = vmatprep.subr.mxu0 0.0
      %886 = vmatpush1.msra.mxu0 0.0
      %887 = vmatprep.subr.mxu0 0.0
      %888 = vmatpush1.msra.mxu0 0.0
      %889 = vmatprep.subr.mxu0 0.0
      %890 = vmatpush1.msra.mxu0 0.0
      %891 = vmatprep.subr.mxu0 0.0
      %892 = vmatpush1.msra.mxu0 0.0
      %893 = vmatprep.subr.mxu0 0.0
      %894 = vmatpush1.msra.mxu0 0.0
      %895 = vmatprep.subr.mxu0 0.0
      %896 = vmatpush1.msra.mxu0 0.0
      %897 = vmatprep.subr.mxu0 0.0
      %898 = vmatpush1.msra.mxu0 0.0
      %899 = vmatprep.subr.mxu0 0.0
      %900 = vmatpush1.msra.mxu0 0.0
      %901 = vmatprep.subr.mxu0 0.0
      %902 = vmatpush1.msra.mxu0 0.0
      %903 = vmatprep.subr.mxu0 0.0
      %904 = vmatpush1.msra.mxu0 0.0
      %905 = vmatprep.subr.mxu0 0.0
      %906 = vmatpush1.msra.mxu0 0.0
      %907 = vmatprep.subr.mxu0 0.0
      %908 = vmatpush1.msra.mxu0 0.0
      %909 = vmatprep.subr.mxu0 0.0
      %910 = vmatpush1.msra.mxu0 0.0
      %911 = vmatprep.subr.mxu0 0.0
      %912 = vmatpush1.msra.mxu0 0.0
      %913 = vmatprep.subr.mxu0 0.0
      %914 = vmatpush1.msra.mxu0 0.0
      %915 = vmatprep.subr.mxu0 0.0
      %916 = vmatpush1.msra.mxu0 0.0
      %917 = vmatprep.subr.mxu0 0.0
      %918 = vmatpush1.msra.mxu0 0.0
      %919 = vmatprep.subr.mxu0 0.0
      %920 = vmatpush1.msra.mxu0 0.0
      %921 = vmatprep.subr.mxu0 0.0
      %922 = vmatpush1.msra.mxu0 0.0
      %923 = vmatprep.subr.mxu0 0.0
      %924 = vmatpush1.msra.mxu0 0.0
      %925 = vmatprep.subr.mxu0 0.0
      %926 = vmatpush1.msra.mxu0 0.0
      %927 = vmatprep.subr.mxu0 0.0
      %928 = vmatpush1.msra.mxu0 0.0
      %929 = vmatprep.subr.mxu0 0.0
      %930 = vmatpush1.msra.mxu0 0.0
      %931 = vmatprep.subr.mxu0 0.0
      %932 = vmatpush1.msra.mxu0 0.0
      %933 = vmatprep.subr.mxu0 0.0
      %934 = vmatpush1.msra.mxu0 0.0
      %935 = vmatprep.subr.mxu0 0.0
      %936 = vmatpush1.msra.mxu0 0.0
      %937 = vmatprep.subr.mxu0 0.0
      %938 = vmatpush1.msra.mxu0 0.0
      %939 = vmatprep.subr.mxu0 0.0
      %940 = vmatpush1.msra.mxu0 0.0
      %941 = vmatprep.mubr.f32.mxu0 0.0
      %942 = vmatmul.mubr.f32.gmra.mrb[0].mxu0 %v854
      %v943 = vpop.f32.mrb[0].mxu0
      %v944 = vadd.f32 0.0, %v943
      %v945 = vpop.f32.mrb[0].mxu0
      %946 = vmatprep.mubr.f32.mxu0 0.0
      %947 = vmatmul.mubr.f32.gmra.mrb[0].mxu0 %v857
      %v948 = vpop.f32.mrb[0].mxu0
      %v949 = vadd.f32 0.0, %v948
      %v950 = vpop.f32.mrb[0].mxu0
      %951 = vmatprep.mubr.f32.mxu0 0.0
      %952 = vmatmul.mubr.f32.gmra.mrb[0].mxu0 %v860
      %v953 = vpop.f32.mrb[0].mxu0
      %v954 = vadd.f32 0.0, %v953
      %v955 = vpop.f32.mrb[0].mxu0
      %956 = vmatprep.mubr.f32.mxu0 0.0
      %957 = vmatmul.mubr.f32.gmra.mrb[0].mxu0 %v863
      %v958 = vpop.f32.mrb[0].mxu0
      %v959 = vadd.f32 0.0, %v958
      %v960 = vpop.f32.mrb[0].mxu0
      %961 = vmatprep.mubr.f32.mxu0 0.0
      %962 = vmatmul.mubr.f32.gmra.mrb[0].mxu0 %v866
      %v963 = vpop.f32.mrb[0].mxu0
      %v964 = vadd.f32 0.0, %v963
      %v965 = vpop.f32.mrb[0].mxu0
      %966 = vmatprep.mubr.f32.mxu0 0.0
      %967 = vmatmul.mubr.f32.gmra.mrb[0].mxu0 %v869
      %v968 = vpop.f32.mrb[0].mxu0
      %v969 = vadd.f32 0.0, %v968
      %v970 = vpop.f32.mrb[0].mxu0
      %971 = vmatprep.mubr.f32.mxu0 0.0
      %972 = vmatmul.mubr.f32.gmra.mrb[0].mxu0 %v872
      %v973 = vpop.f32.mrb[0].mxu0
      %v974 = vadd.f32 0.0, %v973
      %v975 = vpop.f32.mrb[0].mxu0
      %976 = vmatprep.mubr.f32.mxu0 0.0
      %977 = vmatmul.mubr.f32.gmra.mrb[0].mxu0 %v875
      %v978 = vpop.f32.mrb[0].mxu0
      %v979 = vadd.f32 0.0, %v978
      %v980 = vpop.f32.mrb[0].mxu0
      %981 = vdwg.mxu0
      %v982 = vld [vmem:[#allocation2] sm:$0xff]
      %v983 = vld [vmem:[#allocation2 + $0x8] sm:$0xff]
      %v984 = vld [vmem:[#allocation2 + $0x10] sm:$0xff]
      %v985 = vld [vmem:[#allocation2 + $0x18] sm:$0xff]
      %v986 = vld [vmem:[#allocation2 + $0x20] sm:$0xff]
      %v987 = vld [vmem:[#allocation2 + $0x28] sm:$0xff]
      %v988 = vld [vmem:[#allocation2 + $0x30] sm:$0xff]
      %v989 = vld [vmem:[#allocation2 + $0x38] sm:$0xff]
      %v990 = vadd.f32 %v982, %v944
      %v991 = vadd.f32 %v983, %v949
      %v992 = vadd.f32 %v984, %v954
      %v993 = vadd.f32 %v985, %v959
      %v994 = vadd.f32 %v986, %v964
      %v995 = vadd.f32 %v987, %v969
      %v996 = vadd.f32 %v988, %v974
      %v997 = vadd.f32 %v989, %v979
      %998 = vst [vmem:[#allocation2] sm:$0xff] %v990
      %999 = vst [vmem:[#allocation2 + $0x8] sm:$0xff] %v991
      %1000 = vst [vmem:[#allocation2 + $0x10] sm:$0xff] %v992
      %1001 = vst [vmem:[#allocation2 + $0x18] sm:$0xff] %v993
      %1002 = vst [vmem:[#allocation2 + $0x20] sm:$0xff] %v994
      %1003 = vst [vmem:[#allocation2 + $0x28] sm:$0xff] %v995
      %1004 = vst [vmem:[#allocation2 + $0x30] sm:$0xff] %v996
      %1005 = vst [vmem:[#allocation2 + $0x38] sm:$0xff] %v997
      %v1006 = vld [vmem:[%s842 + $0x1] sm:$0xff]
      %v1007 = vld [vmem:[%s842 + $0x21] sm:$0xff]
      %v1008 = vld [vmem:[%s842 + $0x41] sm:$0xff]
      %v1009 = vld [vmem:[%s842 + $0x61] sm:$0xff]
      %v1010 = vld [vmem:[%s842 + $0x81] sm:$0xff]
      %v1011 = vld [vmem:[%s842 + $0xa1] sm:$0xff]
      %v1012 = vld [vmem:[%s842 + $0xc1] sm:$0xff]
      %v1013 = vld [vmem:[%s842 + $0xe1] sm:$0xff]
      %s1014 = scalar_lea.vmem %s1, 40
      %v1015 = vld [vmem:[%s1014] sm:$0xff]
      %v1017 = vsel %vm211, %v1006, 0
      %v1020 = vsel %vm211, %v1007, 0
      %v1023 = vsel %vm211, %v1008, 0
      %v1026 = vsel %vm211, %v1009, 0
      %v1029 = vsel %vm211, %v1010, 0
      %v1032 = vsel %vm211, %v1011, 0
      %v1035 = vsel %vm211, %v1012, 0
      %v1038 = vsel %vm211, %v1013, 0
      %1040 = vmatprep.subr.mxu0 0.0
      %1041 = vmatpush1.msra.mxu0 %v1015
      %1042 = vmatprep.subr.mxu0 0.0
      %1043 = vmatpush1.msra.mxu0 0.0
      %1044 = vmatprep.subr.mxu0 0.0
      %1045 = vmatpush1.msra.mxu0 0.0
      %1046 = vmatprep.subr.mxu0 0.0
      %1047 = vmatpush1.msra.mxu0 0.0
      %1048 = vmatprep.subr.mxu0 0.0
      %1049 = vmatpush1.msra.mxu0 0.0
      %1050 = vmatprep.subr.mxu0 0.0
      %1051 = vmatpush1.msra.mxu0 0.0
      %1052 = vmatprep.subr.mxu0 0.0
      %1053 = vmatpush1.msra.mxu0 0.0
      %1054 = vmatprep.subr.mxu0 0.0
      %1055 = vmatpush1.msra.mxu0 0.0
      %1056 = vmatprep.subr.mxu0 0.0
      %1057 = vmatpush1.msra.mxu0 0.0
      %1058 = vmatprep.subr.mxu0 0.0
      %1059 = vmatpush1.msra.mxu0 0.0
      %1060 = vmatprep.subr.mxu0 0.0
      %1061 = vmatpush1.msra.mxu0 0.0
      %1062 = vmatprep.subr.mxu0 0.0
      %1063 = vmatpush1.msra.mxu0 0.0
      %1064 = vmatprep.subr.mxu0 0.0
      %1065 = vmatpush1.msra.mxu0 0.0
      %1066 = vmatprep.subr.mxu0 0.0
      %1067 = vmatpush1.msra.mxu0 0.0
      %1068 = vmatprep.subr.mxu0 0.0
      %1069 = vmatpush1.msra.mxu0 0.0
      %1070 = vmatprep.subr.mxu0 0.0
      %1071 = vmatpush1.msra.mxu0 0.0
      %1072 = vmatprep.subr.mxu0 0.0
      %1073 = vmatpush1.msra.mxu0 0.0
      %1074 = vmatprep.subr.mxu0 0.0
      %1075 = vmatpush1.msra.mxu0 0.0
      %1076 = vmatprep.subr.mxu0 0.0
      %1077 = vmatpush1.msra.mxu0 0.0
      %1078 = vmatprep.subr.mxu0 0.0
      %1079 = vmatpush1.msra.mxu0 0.0
      %1080 = vmatprep.subr.mxu0 0.0
      %1081 = vmatpush1.msra.mxu0 0.0
      %1082 = vmatprep.subr.mxu0 0.0
      %1083 = vmatpush1.msra.mxu0 0.0
      %1084 = vmatprep.subr.mxu0 0.0
      %1085 = vmatpush1.msra.mxu0 0.0
      %1086 = vmatprep.subr.mxu0 0.0
      %1087 = vmatpush1.msra.mxu0 0.0
      %1088 = vmatprep.subr.mxu0 0.0
      %1089 = vmatpush1.msra.mxu0 0.0
      %1090 = vmatprep.subr.mxu0 0.0
      %1091 = vmatpush1.msra.mxu0 0.0
      %1092 = vmatprep.subr.mxu0 0.0
      %1093 = vmatpush1.msra.mxu0 0.0
      %1094 = vmatprep.subr.mxu0 0.0
      %1095 = vmatpush1.msra.mxu0 0.0
      %1096 = vmatprep.subr.mxu0 0.0
      %1097 = vmatpush1.msra.mxu0 0.0
      %1098 = vmatprep.subr.mxu0 0.0
      %1099 = vmatpush1.msra.mxu0 0.0
      %1100 = vmatprep.subr.mxu0 0.0
      %1101 = vmatpush1.msra.mxu0 0.0
      %1102 = vmatprep.subr.mxu0 0.0
      %1103 = vmatpush1.msra.mxu0 0.0
      %1104 = vmatprep.mubr.f32.mxu0 0.0
      %1105 = vmatmul.mubr.f32.gmra.mrb[0].mxu0 %v1017
      %v1106 = vpop.f32.mrb[0].mxu0
      %v1107 = vadd.f32 0.0, %v1106
      %v1108 = vpop.f32.mrb[0].mxu0
      %1109 = vmatprep.mubr.f32.mxu0 0.0
      %1110 = vmatmul.mubr.f32.gmra.mrb[0].mxu0 %v1020
      %v1111 = vpop.f32.mrb[0].mxu0
      %v1112 = vadd.f32 0.0, %v1111
      %v1113 = vpop.f32.mrb[0].mxu0
      %1114 = vmatprep.mubr.f32.mxu0 0.0
      %1115 = vmatmul.mubr.f32.gmra.mrb[0].mxu0 %v1023
      %v1116 = vpop.f32.mrb[0].mxu0
      %v1117 = vadd.f32 0.0, %v1116
      %v1118 = vpop.f32.mrb[0].mxu0
      %1119 = vmatprep.mubr.f32.mxu0 0.0
      %1120 = vmatmul.mubr.f32.gmra.mrb[0].mxu0 %v1026
      %v1121 = vpop.f32.mrb[0].mxu0
      %v1122 = vadd.f32 0.0, %v1121
      %v1123 = vpop.f32.mrb[0].mxu0
      %1124 = vmatprep.mubr.f32.mxu0 0.0
      %1125 = vmatmul.mubr.f32.gmra.mrb[0].mxu0 %v1029
      %v1126 = vpop.f32.mrb[0].mxu0
      %v1127 = vadd.f32 0.0, %v1126
      %v1128 = vpop.f32.mrb[0].mxu0
      %1129 = vmatprep.mubr.f32.mxu0 0.0
      %1130 = vmatmul.mubr.f32.gmra.mrb[0].mxu0 %v1032
      %v1131 = vpop.f32.mrb[0].mxu0
      %v1132 = vadd.f32 0.0, %v1131
      %v1133 = vpop.f32.mrb[0].mxu0
      %1134 = vmatprep.mubr.f32.mxu0 0.0
      %1135 = vmatmul.mubr.f32.gmra.mrb[0].mxu0 %v1035
      %v1136 = vpop.f32.mrb[0].mxu0
      %v1137 = vadd.f32 0.0, %v1136
      %v1138 = vpop.f32.mrb[0].mxu0
      %1139 = vmatprep.mubr.f32.mxu0 0.0
      %1140 = vmatmul.mubr.f32.gmra.mrb[0].mxu0 %v1038
      %v1141 = vpop.f32.mrb[0].mxu0
      %v1142 = vadd.f32 0.0, %v1141
      %v1143 = vpop.f32.mrb[0].mxu0
      %1144 = vdwg.mxu0
      %v1145 = vld [vmem:[#allocation2] sm:$0xff]
      %v1146 = vld [vmem:[#allocation2 + $0x8] sm:$0xff]
      %v1147 = vld [vmem:[#allocation2 + $0x10] sm:$0xff]
      %v1148 = vld [vmem:[#allocation2 + $0x18] sm:$0xff]
      %v1149 = vld [vmem:[#allocation2 + $0x20] sm:$0xff]
      %v1150 = vld [vmem:[#allocation2 + $0x28] sm:$0xff]
      %v1151 = vld [vmem:[#allocation2 + $0x30] sm:$0xff]
      %v1152 = vld [vmem:[#allocation2 + $0x38] sm:$0xff]
      %v1153 = vadd.f32 %v1145, %v1107
      %v1154 = vadd.f32 %v1146, %v1112
      %v1155 = vadd.f32 %v1147, %v1117
      %v1156 = vadd.f32 %v1148, %v1122
      %v1157 = vadd.f32 %v1149, %v1127
      %v1158 = vadd.f32 %v1150, %v1132
      %v1159 = vadd.f32 %v1151, %v1137
      %v1160 = vadd.f32 %v1152, %v1142
      %1161 = vst [vmem:[#allocation2] sm:$0xff] %v1153
      %1162 = vst [vmem:[#allocation2 + $0x8] sm:$0xff] %v1154
      %1163 = vst [vmem:[#allocation2 + $0x10] sm:$0xff] %v1155
      %1164 = vst [vmem:[#allocation2 + $0x18] sm:$0xff] %v1156
      %1165 = vst [vmem:[#allocation2 + $0x20] sm:$0xff] %v1157
      %1166 = vst [vmem:[#allocation2 + $0x28] sm:$0xff] %v1158
      %1167 = vst [vmem:[#allocation2 + $0x30] sm:$0xff] %v1159
      %1168 = vst [vmem:[#allocation2 + $0x38] sm:$0xff] %v1160
      %v1169 = vld [vmem:[#allocation2] sm:$0xff]
      %v1170 = vld [vmem:[#allocation2 + $0x8] sm:$0xff]
      %v1171 = vld [vmem:[#allocation2 + $0x10] sm:$0xff]
      %v1172 = vld [vmem:[#allocation2 + $0x18] sm:$0xff]
      %v1173 = vld [vmem:[#allocation2 + $0x20] sm:$0xff]
      %v1174 = vld [vmem:[#allocation2 + $0x28] sm:$0xff]
      %v1175 = vld [vmem:[#allocation2 + $0x30] sm:$0xff]
      %v1176 = vld [vmem:[#allocation2 + $0x38] sm:$0xff]
      %v1177 = vld [vmem:[%s2] sm:$0x1]
      %v1179 = vlaneseq
      %v1180 = vshrl.u32 %v1179, 7
      %v1181 = vsub.s32 0, %v1180
      %v1182 = vrot.slane %v1177, %v1181
      %v1184 = vadd.f32 %v1169, %v1182
      %v1185 = vadd.f32 %v1170, %v1182
      %v1186 = vadd.f32 %v1171, %v1182
      %v1187 = vadd.f32 %v1172, %v1182
      %v1188 = vadd.f32 %v1173, %v1182
      %v1189 = vadd.f32 %v1174, %v1182
      %v1190 = vadd.f32 %v1175, %v1182
      %v1191 = vadd.f32 %v1176, %v1182
      %1192 = vst [vmem:[%s197] sm:$0xff] %v1184
      %1193 = vst [vmem:[%s197 + $0x8] sm:$0xff] %v1185
      %1194 = vst [vmem:[%s197 + $0x10] sm:$0xff] %v1186
      %1195 = vst [vmem:[%s197 + $0x18] sm:$0xff] %v1187
      %1196 = vst [vmem:[%s197 + $0x20] sm:$0xff] %v1188
      %1197 = vst [vmem:[%s197 + $0x28] sm:$0xff] %v1189
      %1198 = vst [vmem:[%s197 + $0x30] sm:$0xff] %v1190
      %1199 = vst [vmem:[%s197 + $0x38] sm:$0xff] %v1191
      %s1200 = smul.u32 8, %s19
      %p1201 = scmp.lt.s32.totalorder %s18, 1
      %s1202 = scalar_select %p1201, %s18, 1
      %p1203 = scmp.lt.s32.totalorder %s1200, 7
      %s1204 = scalar_select %p1203, %s1200, 7
      %s1205 = smul.addr %s1202, 8
      %s1206 = sadd.s32 %s1204, %s1205
      %s1207 = smul.addr %s1206, 8
      %s1208 = scalar_lea.vmem %s3, %s1207
      // Predicated region
      $region33: #{conv_layer.1} parent=31 // pred_check
        %p1209 = pneg %p114
      $region34: #{conv_layer.1} parent=31 // pred_check_branch
        %1211 = sbr.rel (%p1209) target = $region36
      $region35: #{conv_layer.1} parent=31 // pred_region
        %s1212 = smul.u32 8, %s19
      $region36: #{conv_layer.1} parent=31 // pred_fallthru
        _
    $region32: #{conv_layer.1} parent=5 // pred_fallthru
      _
    %p1213 = scmp.le.s32.totalorder 2, %s9
    // Predicated region
    $region37: #{conv_layer.1} parent=5 // pred_check
      %p1214 = pneg %p1213
    $region38: #{conv_layer.1} parent=5 // pred_check_branch
      %1216 = sbr.rel (%p1214) target = $region40
    $region39: #{conv_layer.1} parent=5 // pred_region
      %s1217 = ssub.s32 %s9, 2
      // Predicated region
      $region41: #{conv_layer.1} parent=39 // pred_check
        %p1218 = pneg %p120
      $region42: #{conv_layer.1} parent=39 // pred_check_branch
        %1220 = sbr.rel (%p1218) target = $region44
      $region43: #{conv_layer.1} parent=39 // pred_region
        %s1221 = smul.u32 8, %s21
        %p1222 = scmp.lt.s32.totalorder %s20, 1
        %s1223 = scalar_select %p1222, %s20, 1
        %p1224 = scmp.lt.s32.totalorder %s1221, 7
        %s1225 = scalar_select %p1224, %s1221, 7
        %s1226 = smul.addr %s1223, 8
        %s1227 = sadd.s32 %s1225, %s1226
        %s1228 = smul.addr %s1227, 8
        %s1229 = scalar_lea.vmem %s3, %s1228
      $region44: #{conv_layer.1} parent=39 // pred_fallthru
        _
    $region40: #{conv_layer.1} parent=5 // pred_fallthru
      _
  $region6: #{conv_layer.1} parent=0 // loop_footer
    %s13 = sadd.s32 1, %s9
  $region7: #{conv_layer.1} parent=0 // loop_footer_branch
    %8 = sbr.rel target = $region3
  $region8: #{conv_layer.1} parent=0 // loop_exit
    _

</llo_original>
